<compile_context>
chip_gen: v7x
topology: tpu7x:2x2x1
jax: 0.10.0
libtpu: 0.0.40
codegen_flags: <defaults>
</compile_context>

<pallas_src>
import jax
import jax.numpy as jnp
from jax.experimental import pallas as pl
from jax.experimental.pallas import tpu as pltpu

_LEAKY_SLOPE = 0.2
_LANE = 128
_SUBLANE = 8
_DEFAULT_TILE_CAP = 512  # rows; keeps double-buffered x blocks well under VMEM


def _round_up(n, m):
    return ((n + m - 1) // m) * m


def _make_discriminator_kernel(num_layers, compute_dtype):
    """Kernel over one (batch_tile, input_dim) block; whole MLP stays in VMEM."""

    def kernel(x_ref, *refs):
        out_ref = refs[-1]
        wb_refs = refs[:-1]  # (w0, b0, w1, b1, ...)

        h = x_ref[...]  # bf16 batch tile
        for i in range(num_layers):
            w = wb_refs[2 * i][...]        # [din, dout], compute_dtype (bf16)
            b = wb_refs[2 * i + 1][...]    # [1, dout], f32
            # MXU matmul: bf16 operands, f32 accumulate.
            acc = jnp.dot(h.astype(compute_dtype), w,
                          preferred_element_type=jnp.float32)
            h = acc + b                    # f32 bias add (VPU)
            if i < num_layers - 1:
                # LeakyReLU(0.2) == max(h, 0.2*h) for slope < 1.
                # Dropout is identity in eval mode.
                h = jnp.maximum(h, _LEAKY_SLOPE * h)
        out_ref[...] = h.astype(out_ref.dtype)

    return kernel


def _choose_batch_tile(batch, requested):
    tile = _DEFAULT_TILE_CAP if requested is None else requested
    tile = min(tile, batch)
    tile = max(_SUBLANE, (tile // _SUBLANE) * _SUBLANE)  # multiple of 8 sublanes
    return tile


def discriminator_forward(x, params, *, batch_tile=None,
                          compute_dtype=jnp.bfloat16):
    """x: [B, input_dim] float32; params: list of (W[in, out], b[1, out])."""
    B, input_dim = x.shape
    num_layers = len(params)
    num_outputs = params[-1][0].shape[1]

    # ---- lane-dense output: pad final layer's N to a multiple of 128 --------
    padded_out = _round_up(num_outputs, _LANE)
    w_last, b_last = params[-1]
    if padded_out != num_outputs:
        w_last = jnp.pad(w_last, ((0, 0), (0, padded_out - num_outputs)))
        b_last = jnp.pad(b_last, ((0, 0), (0, padded_out - num_outputs)))
    proc_params = list(params[:-1]) + [(w_last, b_last)]

    # ---- cast weights to bf16 (halves weight DMA), biases stay f32 ----------
    flat_wb = []
    for w, b in proc_params:
        flat_wb.append(w.astype(compute_dtype))
        flat_wb.append(b.astype(jnp.float32))

    # ---- x is consumed in bf16 by the MXU anyway: halve batch-side DMA ------
    x_c = x.astype(compute_dtype)

    # ---- batch tiling: cap tile, round to sublane multiple, pad B ----------
    tile = _choose_batch_tile(B, batch_tile)
    B_pad = _round_up(B, tile)
    if B_pad != B:
        x_c = jnp.pad(x_c, ((0, B_pad - B), (0, 0)))
    grid = (B_pad // tile,)

    # ---- specs ---------------------------------------------------------------
    in_specs = [pl.BlockSpec((tile, input_dim), lambda i: (i, 0))]
    for arr in flat_wb:
        # Weights/biases replicated across the batch grid (full-extent blocks,
        # constant index -> stays resident, no re-DMA per grid step).
        in_specs.append(pl.BlockSpec(arr.shape, lambda i: (0, 0)))
    out_spec = pl.BlockSpec((tile, padded_out), lambda i: (i, 0))

    # ---- cost estimate so XLA can schedule/overlap this small custom call ---
    flops = 0
    din = input_dim
    for w, _ in proc_params:
        dout = w.shape[1]
        flops += 2 * B_pad * din * dout
        din = dout
    bytes_accessed = (x_c.size * x_c.dtype.itemsize
                      + B_pad * padded_out * 4
                      + sum(a.size * a.dtype.itemsize for a in flat_wb))
    cost = pl.CostEstimate(flops=flops, transcendentals=0,
                           bytes_accessed=bytes_accessed)

    kernel = _make_discriminator_kernel(num_layers, compute_dtype)

    out_padded = pl.pallas_call(
        kernel,
        out_shape=jax.ShapeDtypeStruct((B_pad, padded_out), jnp.float32),
        grid_spec=pltpu.PrefetchScalarGridSpec(
            num_scalar_prefetch=0,
            grid=grid,
            in_specs=in_specs,
            out_specs=out_spec,
        ),
        compiler_params=pltpu.CompilerParams(
            dimension_semantics=("parallel",),
        ),
        cost_estimate=cost,
    )(x_c, *flat_wb)

    # Strip batch padding and the zero lane-padding columns.
    return out_padded[:B, :num_outputs]


def init_discriminator_params(key, input_dim, num_outputs=2, dis_layers=3,
                              dis_hidden_dim=128):
    """Deterministic Kaiming-uniform-ish init mimicking nn.Linear defaults.

    Returns list of (W, b) with W: [in, out], b: [1, out]."""
    params = []
    dims_in = [input_dim] + [dis_hidden_dim] * dis_layers
    dims_out = [dis_hidden_dim] * dis_layers + [num_outputs]
    for din, dout in zip(dims_in, dims_out):
        key, kw, kb = jax.random.split(key, 3)
        bound = 1.0 / (din ** 0.5)
        w = jax.random.uniform(kw, (din, dout), jnp.float32, -bound, bound)
        b = jax.random.uniform(kb, (1, dout), jnp.float32, -bound, bound)
        params.append((w, b))
    return params


def reference_forward(x, params, compute_dtype=jnp.bfloat16):
    """Pure-JAX reference with the same bf16-operand / f32-accumulate semantics."""
    h = x.astype(compute_dtype)
    n = len(params)
    for i, (w, b) in enumerate(params):
        h = jnp.dot(h.astype(compute_dtype), w.astype(compute_dtype),
                    preferred_element_type=jnp.float32) + b.astype(jnp.float32)
        if i < n - 1:
            h = jnp.maximum(h, _LEAKY_SLOPE * h)
    return h


if __name__ == "__main__":
    key = jax.random.PRNGKey(0)
    kx, kp = jax.random.split(key)

    B = 64
    INPUT_DIM = 64
    HIDDEN = 128
    NUM_OUTPUTS = 2
    DIS_LAYERS = 3

    x = jax.random.normal(kx, (B, INPUT_DIM), dtype=jnp.float32)
    params = init_discriminator_params(
        kp, INPUT_DIM, num_outputs=NUM_OUTPUTS,
        dis_layers=DIS_LAYERS, dis_hidden_dim=HIDDEN)

    # batch_tile=16 -> 4 pipelined grid steps (demonstrates DMA overlap /
    # megacore sharding); default cap (512) is used for production batches.
    out = discriminator_forward(x, params, batch_tile=16)
    out = jax.block_until_ready(out)

    ref = reference_forward(x, params)
    assert out.shape == (B, NUM_OUTPUTS), out.shape
    assert jnp.allclose(out, ref, atol=1e-2, rtol=1e-2), "mismatch vs reference"

    print("KERNEL_OK")
</pallas_src>

<mosaic_0001>
module attributes {stable_mosaic.version = 11 : i64} {
  func.func @kernel(%arg0: i32, %arg1: memref<16x64xbf16, #tpu.memory_space<vmem>>, %arg2: memref<64x128xbf16, #tpu.memory_space<vmem>>, %arg3: memref<1x128xf32, #tpu.memory_space<vmem>>, %arg4: memref<128x128xbf16, #tpu.memory_space<vmem>>, %arg5: memref<1x128xf32, #tpu.memory_space<vmem>>, %arg6: memref<128x128xbf16, #tpu.memory_space<vmem>>, %arg7: memref<1x128xf32, #tpu.memory_space<vmem>>, %arg8: memref<128x128xbf16, #tpu.memory_space<vmem>>, %arg9: memref<1x128xf32, #tpu.memory_space<vmem>>, %arg10: memref<16x128xf32, #tpu.memory_space<vmem>>) attributes {dimension_semantics = [#tpu.dimension_semantics<parallel>], iteration_bounds = array<i64: 4>, scalar_prefetch = 0 : i64, scratch_operands = 0 : i64, tpu.core_type = #tpu.core_type<tc>, window_params = [{transform_indices = @transform_0, window_bounds = array<i64: 16, 64>}, {pipeline_mode = #tpu.pipeline_mode<synchronous>, transform_indices = @transform_1, window_bounds = array<i64: 64, 128>}, {pipeline_mode = #tpu.pipeline_mode<synchronous>, transform_indices = @transform_2, window_bounds = array<i64: 1, 128>}, {pipeline_mode = #tpu.pipeline_mode<synchronous>, transform_indices = @transform_3, window_bounds = array<i64: 128, 128>}, {pipeline_mode = #tpu.pipeline_mode<synchronous>, transform_indices = @transform_4, window_bounds = array<i64: 1, 128>}, {pipeline_mode = #tpu.pipeline_mode<synchronous>, transform_indices = @transform_5, window_bounds = array<i64: 128, 128>}, {pipeline_mode = #tpu.pipeline_mode<synchronous>, transform_indices = @transform_6, window_bounds = array<i64: 1, 128>}, {pipeline_mode = #tpu.pipeline_mode<synchronous>, transform_indices = @transform_7, window_bounds = array<i64: 128, 128>}, {pipeline_mode = #tpu.pipeline_mode<synchronous>, transform_indices = @transform_8, window_bounds = array<i64: 1, 128>}, {transform_indices = @transform_9, window_bounds = array<i64: 16, 128>}]} {
    %c0 = arith.constant 0 : index
    %c0_0 = arith.constant 0 : index
    %0 = vector.load %arg1[%c0, %c0_0] : memref<16x64xbf16, #tpu.memory_space<vmem>>, vector<16x64xbf16>
    %c0_1 = arith.constant 0 : index
    %c0_2 = arith.constant 0 : index
    %1 = vector.load %arg2[%c0_1, %c0_2] : memref<64x128xbf16, #tpu.memory_space<vmem>>, vector<64x128xbf16>
    %c0_3 = arith.constant 0 : index
    %c0_4 = arith.constant 0 : index
    %2 = vector.load %arg3[%c0_3, %c0_4] : memref<1x128xf32, #tpu.memory_space<vmem>>, vector<1x128xf32>
    %cst = arith.constant dense<0.000000e+00> : vector<16x128xf32>
    %3 = tpu.matmul %0, %1, %cst {dimension_numbers = #tpu.dot_dimension_numbers<[1], [0], [0], [1], [0, 0, 1, 1], [], []>} : vector<16x64xbf16>, vector<64x128xbf16>, vector<16x128xf32> -> vector<16x128xf32>
    %4 = vector.broadcast %2 : vector<1x128xf32> to vector<16x128xf32>
    %5 = arith.addf %3, %4 : vector<16x128xf32>
    %cst_5 = arith.constant 2.000000e-01 : f32
    %6 = vector.broadcast %cst_5 : f32 to vector<16x128xf32>
    %7 = arith.mulf %6, %5 : vector<16x128xf32>
    %8 = arith.maximumf %5, %7 : vector<16x128xf32>
    %c0_6 = arith.constant 0 : index
    %c0_7 = arith.constant 0 : index
    %9 = vector.load %arg4[%c0_6, %c0_7] : memref<128x128xbf16, #tpu.memory_space<vmem>>, vector<128x128xbf16>
    %c0_8 = arith.constant 0 : index
    %c0_9 = arith.constant 0 : index
    %10 = vector.load %arg5[%c0_8, %c0_9] : memref<1x128xf32, #tpu.memory_space<vmem>>, vector<1x128xf32>
    %11 = arith.truncf %8 : vector<16x128xf32> to vector<16x128xbf16>
    %cst_10 = arith.constant dense<0.000000e+00> : vector<16x128xf32>
    %12 = tpu.matmul %11, %9, %cst_10 {dimension_numbers = #tpu.dot_dimension_numbers<[1], [0], [0], [1], [0, 0, 1, 1], [], []>} : vector<16x128xbf16>, vector<128x128xbf16>, vector<16x128xf32> -> vector<16x128xf32>
    %13 = vector.broadcast %10 : vector<1x128xf32> to vector<16x128xf32>
    %14 = arith.addf %12, %13 : vector<16x128xf32>
    %cst_11 = arith.constant 2.000000e-01 : f32
    %15 = vector.broadcast %cst_11 : f32 to vector<16x128xf32>
    %16 = arith.mulf %15, %14 : vector<16x128xf32>
    %17 = arith.maximumf %14, %16 : vector<16x128xf32>
    %c0_12 = arith.constant 0 : index
    %c0_13 = arith.constant 0 : index
    %18 = vector.load %arg6[%c0_12, %c0_13] : memref<128x128xbf16, #tpu.memory_space<vmem>>, vector<128x128xbf16>
    %c0_14 = arith.constant 0 : index
    %c0_15 = arith.constant 0 : index
    %19 = vector.load %arg7[%c0_14, %c0_15] : memref<1x128xf32, #tpu.memory_space<vmem>>, vector<1x128xf32>
    %20 = arith.truncf %17 : vector<16x128xf32> to vector<16x128xbf16>
    %cst_16 = arith.constant dense<0.000000e+00> : vector<16x128xf32>
    %21 = tpu.matmul %20, %18, %cst_16 {dimension_numbers = #tpu.dot_dimension_numbers<[1], [0], [0], [1], [0, 0, 1, 1], [], []>} : vector<16x128xbf16>, vector<128x128xbf16>, vector<16x128xf32> -> vector<16x128xf32>
    %22 = vector.broadcast %19 : vector<1x128xf32> to vector<16x128xf32>
    %23 = arith.addf %21, %22 : vector<16x128xf32>
    %cst_17 = arith.constant 2.000000e-01 : f32
    %24 = vector.broadcast %cst_17 : f32 to vector<16x128xf32>
    %25 = arith.mulf %24, %23 : vector<16x128xf32>
    %26 = arith.maximumf %23, %25 : vector<16x128xf32>
    %c0_18 = arith.constant 0 : index
    %c0_19 = arith.constant 0 : index
    %27 = vector.load %arg8[%c0_18, %c0_19] : memref<128x128xbf16, #tpu.memory_space<vmem>>, vector<128x128xbf16>
    %c0_20 = arith.constant 0 : index
    %c0_21 = arith.constant 0 : index
    %28 = vector.load %arg9[%c0_20, %c0_21] : memref<1x128xf32, #tpu.memory_space<vmem>>, vector<1x128xf32>
    %29 = arith.truncf %26 : vector<16x128xf32> to vector<16x128xbf16>
    %cst_22 = arith.constant dense<0.000000e+00> : vector<16x128xf32>
    %30 = tpu.matmul %29, %27, %cst_22 {dimension_numbers = #tpu.dot_dimension_numbers<[1], [0], [0], [1], [0, 0, 1, 1], [], []>} : vector<16x128xbf16>, vector<128x128xbf16>, vector<16x128xf32> -> vector<16x128xf32>
    %31 = vector.broadcast %28 : vector<1x128xf32> to vector<16x128xf32>
    %32 = arith.addf %30, %31 : vector<16x128xf32>
    %c0_23 = arith.constant 0 : index
    %c0_24 = arith.constant 0 : index
    %33 = vector.load %arg10[%c0_23, %c0_24] : memref<16x128xf32, #tpu.memory_space<vmem>>, vector<16x128xf32>
    tpu.vector_store %arg10[%c0_23, %c0_24], %32 {strides = array<i32>} : memref<16x128xf32, #tpu.memory_space<vmem>>, vector<16x128xf32>,
    return
  }
  func.func @transform_0(%arg0: i32) -> (i32, i32) {
    %c0_i32 = arith.constant 0 : i32
    %c0_i32_0 = arith.constant 0 : i32
    return %arg0, %c0_i32 : i32, i32
  }
  func.func @transform_1(%arg0: i32) -> (i32, i32) {
    %c0_i32 = arith.constant 0 : i32
    %c0_i32_0 = arith.constant 0 : i32
    %c0_i32_1 = arith.constant 0 : i32
    return %c0_i32, %c0_i32_0 : i32, i32
  }
  func.func @transform_2(%arg0: i32) -> (i32, i32) {
    %c0_i32 = arith.constant 0 : i32
    %c0_i32_0 = arith.constant 0 : i32
    %c0_i32_1 = arith.constant 0 : i32
    return %c0_i32, %c0_i32_0 : i32, i32
  }
  func.func @transform_3(%arg0: i32) -> (i32, i32) {
    %c0_i32 = arith.constant 0 : i32
    %c0_i32_0 = arith.constant 0 : i32
    %c0_i32_1 = arith.constant 0 : i32
    return %c0_i32, %c0_i32_0 : i32, i32
  }
  func.func @transform_4(%arg0: i32) -> (i32, i32) {
    %c0_i32 = arith.constant 0 : i32
    %c0_i32_0 = arith.constant 0 : i32
    %c0_i32_1 = arith.constant 0 : i32
    return %c0_i32, %c0_i32_0 : i32, i32
  }
  func.func @transform_5(%arg0: i32) -> (i32, i32) {
    %c0_i32 = arith.constant 0 : i32
    %c0_i32_0 = arith.constant 0 : i32
    %c0_i32_1 = arith.constant 0 : i32
    return %c0_i32, %c0_i32_0 : i32, i32
  }
  func.func @transform_6(%arg0: i32) -> (i32, i32) {
    %c0_i32 = arith.constant 0 : i32
    %c0_i32_0 = arith.constant 0 : i32
    %c0_i32_1 = arith.constant 0 : i32
    return %c0_i32, %c0_i32_0 : i32, i32
  }
  func.func @transform_7(%arg0: i32) -> (i32, i32) {
    %c0_i32 = arith.constant 0 : i32
    %c0_i32_0 = arith.constant 0 : i32
    %c0_i32_1 = arith.constant 0 : i32
    return %c0_i32, %c0_i32_0 : i32, i32
  }
  func.func @transform_8(%arg0: i32) -> (i32, i32) {
    %c0_i32 = arith.constant 0 : i32
    %c0_i32_0 = arith.constant 0 : i32
    %c0_i32_1 = arith.constant 0 : i32
    return %c0_i32, %c0_i32_0 : i32, i32
  }
  func.func @transform_9(%arg0: i32) -> (i32, i32) {
    %c0_i32 = arith.constant 0 : i32
    %c0_i32_0 = arith.constant 0 : i32
    return %arg0, %c0_i32 : i32, i32
  }
}

</mosaic_0001>

<llo_original>
// kernel: tpu_custom_call.1
$region0: #{tpu_custom_call.1}
  #allocation0 [shape = 'u32[]', space=smem, size = 0x4, offset = 0x4, fixed_abs, tag = 'smem constant byte address 0x4 - core index']
  #allocation1 [shape = 'u32[144,128]{1,0:T(1,128)}', space=vmem, size = 0x12000, scoped, tag = 'internal scratch']
  %s0 = inlined_call_operand.hbm [shape: bf16[64,64], index: 0, kind: input, shape index: {}]
  %s1 = inlined_call_operand.hbm [shape: bf16[64,128], index: 1, kind: input, shape index: {}]
  %s2 = inlined_call_operand.vmem [shape: f32[1,128], index: 2, kind: input, shape index: {}]
  %s3 = inlined_call_operand.hbm [shape: bf16[128,128], index: 3, kind: input, shape index: {}]
  %s4 = inlined_call_operand.vmem [shape: f32[1,128], index: 4, kind: input, shape index: {}]
  %s5 = inlined_call_operand.hbm [shape: bf16[128,128], index: 5, kind: input, shape index: {}]
  %s6 = inlined_call_operand.vmem [shape: f32[1,128], index: 6, kind: input, shape index: {}]
  %s7 = inlined_call_operand.hbm [shape: bf16[128,128], index: 7, kind: input, shape index: {}]
  %s8 = inlined_call_operand.vmem [shape: f32[1,128], index: 8, kind: input, shape index: {}]
  %s9 = inlined_call_operand.hbm [shape: f32[64,128], index: 9, kind: output, shape index: {}]
  %s10 = sld [smem:[#allocation0]]
  $region89: #{tpu_custom_call.1} parent=0
    _
  %s12 = ssub.s32 1, %s10
  %s13 = scalar_select 0, %s12, %s10
  $region1: #{tpu_custom_call.1} parent=0
    #allocation2 [shape = 'u8[8192]{0}', space=vmem, size = 0x2000, scoped, tag = 'input window, operand 0']
    #allocation3 [shape = 's32[2]{0}', space=sflag, size = 0x8, scoped, tag = 'scoped memory for tpu_custom_call.1']
    #allocation4 [shape = 's32[2]{0}', space=sflag, size = 0x8, scoped, tag = 'scoped memory for tpu_custom_call.1']
    #allocation5 [shape = 'u8[16384]{0}', space=vmem, size = 0x4000, scoped, tag = 'input window, operand 1, single buffered']
    #allocation6 [shape = 's32[1]{0}', space=sflag, size = 0x4, scoped, tag = 'scoped memory for tpu_custom_call.1']
    #allocation7 [shape = 'u8[32768]{0}', space=vmem, size = 0x8000, scoped, tag = 'input window, operand 3, single buffered']
    #allocation8 [shape = 'u8[32768]{0}', space=vmem, size = 0x8000, scoped, tag = 'input window, operand 5, single buffered']
    #allocation9 [shape = 's32[1]{0}', space=sflag, size = 0x4, scoped, tag = 'scoped memory for tpu_custom_call.1']
    #allocation10 [shape = 'u8[32768]{0}', space=vmem, size = 0x8000, scoped, tag = 'input window, operand 7, single buffered']
    #allocation11 [shape = 'u8[16384]{0}', space=vmem, size = 0x4000, scoped, tag = 'output window, operand 0']
    %14 = vsyncpa [#allocation3], 0
    %s15 = scalar_lea.sflag [#allocation3], 1
    %16 = vsyncpa %s15, 0
    %17 = vsyncpa [#allocation6], 0
    %18 = vsyncpa [#allocation9], 0
    %19 = vsyncpa [#allocation4], 0
    %s20 = scalar_lea.sflag [#allocation4], 1
    %21 = vsyncpa %s20, 0
    loop: start=0, step=1, limit=6
    $region2: #{tpu_custom_call.1} parent=1 // loop_pre_header
      _
    $region3: #{tpu_custom_call.1} parent=1 // loop_header
      %s23 = sphi 0, %s27
      %p24 = scmp.ge.s32.totalorder %s23, 6
      %s33 = sphi 0, %s35
      %s36 = sphi 0, %s33
      %s37 = sphi 0, %s36
      %s53 = sphi 0, %s37
      %s57 = sphi 0, %s57
      %s59 = sphi 0, %s57
      %s60 = sphi 0, %s59
      %s74 = sphi 0, %s60
      %s78 = sphi 0, %s78
      %s80 = sphi 0, %s78
      %s81 = sphi 0, %s80
      %s95 = sphi 0, %s81
      %s99 = sphi 0, %s99
      %s101 = sphi 0, %s99
      %s102 = sphi 0, %s101
      %s116 = sphi 0, %s102
      %s120 = sphi 0, %s120
      %s122 = sphi 0, %s120
      %s123 = sphi 0, %s122
      %s137 = sphi 0, %s123
      %s141 = sphi 0, %s141
      %s143 = sphi 0, %s141
      %s144 = sphi 0, %s143
      %s158 = sphi 0, %s144
      %s162 = sphi 0, %s162
      %s164 = sphi 0, %s162
      %s165 = sphi 0, %s164
      %s179 = sphi 0, %s165
      %s183 = sphi 0, %s183
      %s185 = sphi 0, %s183
      %s186 = sphi 0, %s185
      %s200 = sphi 0, %s186
      %s204 = sphi 0, %s204
      %s206 = sphi 0, %s204
      %s207 = sphi 0, %s206
      %s221 = sphi 0, %s207
      %s227 = sphi 0, %s229
      %s230 = sphi 0, %s227
      %s231 = sphi 0, %s230
      %s247 = sphi 0, %s231
    $region4: #{tpu_custom_call.1} parent=1 // loop_header_branch
      %26 = sbr.rel (%p24) target = $region8
    $region5: #{tpu_custom_call.1} parent=1 // loop_body
      %s28 = ssub.s32 %s23, 1
      %s29 = ssub.s32 %s23, 2
      %s30 = sadd.s32 %s23, 1
      %s31 = ssub.s32 %s23, %s30
      %p32 = scmp.eq.s32.totalorder %s31, 0
      %s34 = sadd.s32 %s33, 1
      %s35 = scalar_select %p32, %s33, %s34
      %p38 = pneg %p32
      %p39 = scmp.eq.s32.totalorder %s23, 3
      %p40 = por %p38, %p39
      %p41 = scmp.ne.s32.totalorder %s33, %s36
      %p42 = scmp.eq.s32.totalorder %s23, 0
      %p43 = por %p41, %p42
      %p44 = scmp.ne.s32.totalorder %s33, %s36
      %p45 = scmp.eq.s32.totalorder %s28, 3
      %p46 = por %p44, %p45
      %p47 = scmp.ne.s32.totalorder %s36, %s37
      %p48 = scmp.eq.s32.totalorder %s28, 0
      %p49 = por %p47, %p48
      %p50 = scmp.ne.s32.totalorder %s36, %s37
      %p51 = scmp.eq.s32.totalorder %s29, 3
      %p52 = por %p50, %p51
      %p54 = scmp.ne.s32.totalorder %s37, %s53
      %p55 = scmp.eq.s32.totalorder %s29, 0
      %p56 = por %p54, %p55
      %s58 = sadd.s32 %s57, 1
      %p61 = scmp.eq.s32.totalorder %s23, 3
      %p62 = scmp.ne.s32.totalorder %s57, %s59
      %p63 = scmp.eq.s32.totalorder %s23, 0
      %p64 = por %p62, %p63
      %p65 = scmp.ne.s32.totalorder %s57, %s59
      %p66 = scmp.eq.s32.totalorder %s28, 3
      %p67 = por %p65, %p66
      %p68 = scmp.ne.s32.totalorder %s59, %s60
      %p69 = scmp.eq.s32.totalorder %s28, 0
      %p70 = por %p68, %p69
      %p71 = scmp.ne.s32.totalorder %s59, %s60
      %p72 = scmp.eq.s32.totalorder %s29, 3
      %p73 = por %p71, %p72
      %p75 = scmp.ne.s32.totalorder %s60, %s74
      %p76 = scmp.eq.s32.totalorder %s29, 0
      %p77 = por %p75, %p76
      %s79 = sadd.s32 %s78, 1
      %p82 = scmp.eq.s32.totalorder %s23, 3
      %p83 = scmp.ne.s32.totalorder %s78, %s80
      %p84 = scmp.eq.s32.totalorder %s23, 0
      %p85 = por %p83, %p84
      %p86 = scmp.ne.s32.totalorder %s78, %s80
      %p87 = scmp.eq.s32.totalorder %s28, 3
      %p88 = por %p86, %p87
      %p89 = scmp.ne.s32.totalorder %s80, %s81
      %p90 = scmp.eq.s32.totalorder %s28, 0
      %p91 = por %p89, %p90
      %p92 = scmp.ne.s32.totalorder %s80, %s81
      %p93 = scmp.eq.s32.totalorder %s29, 3
      %p94 = por %p92, %p93
      %p96 = scmp.ne.s32.totalorder %s81, %s95
      %p97 = scmp.eq.s32.totalorder %s29, 0
      %p98 = por %p96, %p97
      %s100 = sadd.s32 %s99, 1
      %p103 = scmp.eq.s32.totalorder %s23, 3
      %p104 = scmp.ne.s32.totalorder %s99, %s101
      %p105 = scmp.eq.s32.totalorder %s23, 0
      %p106 = por %p104, %p105
      %p107 = scmp.ne.s32.totalorder %s99, %s101
      %p108 = scmp.eq.s32.totalorder %s28, 3
      %p109 = por %p107, %p108
      %p110 = scmp.ne.s32.totalorder %s101, %s102
      %p111 = scmp.eq.s32.totalorder %s28, 0
      %p112 = por %p110, %p111
      %p113 = scmp.ne.s32.totalorder %s101, %s102
      %p114 = scmp.eq.s32.totalorder %s29, 3
      %p115 = por %p113, %p114
      %p117 = scmp.ne.s32.totalorder %s102, %s116
      %p118 = scmp.eq.s32.totalorder %s29, 0
      %p119 = por %p117, %p118
      %s121 = sadd.s32 %s120, 1
      %p124 = scmp.eq.s32.totalorder %s23, 3
      %p125 = scmp.ne.s32.totalorder %s120, %s122
      %p126 = scmp.eq.s32.totalorder %s23, 0
      %p127 = por %p125, %p126
      %p128 = scmp.ne.s32.totalorder %s120, %s122
      %p129 = scmp.eq.s32.totalorder %s28, 3
      %p130 = por %p128, %p129
      %p131 = scmp.ne.s32.totalorder %s122, %s123
      %p132 = scmp.eq.s32.totalorder %s28, 0
      %p133 = por %p131, %p132
      %p134 = scmp.ne.s32.totalorder %s122, %s123
      %p135 = scmp.eq.s32.totalorder %s29, 3
      %p136 = por %p134, %p135
      %p138 = scmp.ne.s32.totalorder %s123, %s137
      %p139 = scmp.eq.s32.totalorder %s29, 0
      %p140 = por %p138, %p139
      %s142 = sadd.s32 %s141, 1
      %p145 = scmp.eq.s32.totalorder %s23, 3
      %p146 = scmp.ne.s32.totalorder %s141, %s143
      %p147 = scmp.eq.s32.totalorder %s23, 0
      %p148 = por %p146, %p147
      %p149 = scmp.ne.s32.totalorder %s141, %s143
      %p150 = scmp.eq.s32.totalorder %s28, 3
      %p151 = por %p149, %p150
      %p152 = scmp.ne.s32.totalorder %s143, %s144
      %p153 = scmp.eq.s32.totalorder %s28, 0
      %p154 = por %p152, %p153
      %p155 = scmp.ne.s32.totalorder %s143, %s144
      %p156 = scmp.eq.s32.totalorder %s29, 3
      %p157 = por %p155, %p156
      %p159 = scmp.ne.s32.totalorder %s144, %s158
      %p160 = scmp.eq.s32.totalorder %s29, 0
      %p161 = por %p159, %p160
      %s163 = sadd.s32 %s162, 1
      %p166 = scmp.eq.s32.totalorder %s23, 3
      %p167 = scmp.ne.s32.totalorder %s162, %s164
      %p168 = scmp.eq.s32.totalorder %s23, 0
      %p169 = por %p167, %p168
      %p170 = scmp.ne.s32.totalorder %s162, %s164
      %p171 = scmp.eq.s32.totalorder %s28, 3
      %p172 = por %p170, %p171
      %p173 = scmp.ne.s32.totalorder %s164, %s165
      %p174 = scmp.eq.s32.totalorder %s28, 0
      %p175 = por %p173, %p174
      %p176 = scmp.ne.s32.totalorder %s164, %s165
      %p177 = scmp.eq.s32.totalorder %s29, 3
      %p178 = por %p176, %p177
      %p180 = scmp.ne.s32.totalorder %s165, %s179
      %p181 = scmp.eq.s32.totalorder %s29, 0
      %p182 = por %p180, %p181
      %s184 = sadd.s32 %s183, 1
      %p187 = scmp.eq.s32.totalorder %s23, 3
      %p188 = scmp.ne.s32.totalorder %s183, %s185
      %p189 = scmp.eq.s32.totalorder %s23, 0
      %p190 = por %p188, %p189
      %p191 = scmp.ne.s32.totalorder %s183, %s185
      %p192 = scmp.eq.s32.totalorder %s28, 3
      %p193 = por %p191, %p192
      %p194 = scmp.ne.s32.totalorder %s185, %s186
      %p195 = scmp.eq.s32.totalorder %s28, 0
      %p196 = por %p194, %p195
      %p197 = scmp.ne.s32.totalorder %s185, %s186
      %p198 = scmp.eq.s32.totalorder %s29, 3
      %p199 = por %p197, %p198
      %p201 = scmp.ne.s32.totalorder %s186, %s200
      %p202 = scmp.eq.s32.totalorder %s29, 0
      %p203 = por %p201, %p202
      %s205 = sadd.s32 %s204, 1
      %p208 = scmp.eq.s32.totalorder %s23, 3
      %p209 = scmp.ne.s32.totalorder %s204, %s206
      %p210 = scmp.eq.s32.totalorder %s23, 0
      %p211 = por %p209, %p210
      %p212 = scmp.ne.s32.totalorder %s204, %s206
      %p213 = scmp.eq.s32.totalorder %s28, 3
      %p214 = por %p212, %p213
      %p215 = scmp.ne.s32.totalorder %s206, %s207
      %p216 = scmp.eq.s32.totalorder %s28, 0
      %p217 = por %p215, %p216
      %p218 = scmp.ne.s32.totalorder %s206, %s207
      %p219 = scmp.eq.s32.totalorder %s29, 3
      %p220 = por %p218, %p219
      %p222 = scmp.ne.s32.totalorder %s207, %s221
      %p223 = scmp.eq.s32.totalorder %s29, 0
      %p224 = por %p222, %p223
      %s225 = ssub.s32 %s23, %s30
      %p226 = scmp.eq.s32.totalorder %s225, 0
      %s228 = sadd.s32 %s227, 1
      %s229 = scalar_select %p226, %s227, %s228
      %p232 = pneg %p226
      %p233 = scmp.eq.s32.totalorder %s23, 3
      %p234 = por %p232, %p233
      %p235 = scmp.ne.s32.totalorder %s227, %s230
      %p236 = scmp.eq.s32.totalorder %s23, 0
      %p237 = por %p235, %p236
      %p238 = scmp.ne.s32.totalorder %s227, %s230
      %p239 = scmp.eq.s32.totalorder %s28, 3
      %p240 = por %p238, %p239
      %p241 = scmp.ne.s32.totalorder %s230, %s231
      %p242 = scmp.eq.s32.totalorder %s28, 0
      %p243 = por %p241, %p242
      %p244 = scmp.ne.s32.totalorder %s230, %s231
      %p245 = scmp.eq.s32.totalorder %s29, 3
      %p246 = por %p244, %p245
      %p248 = scmp.ne.s32.totalorder %s231, %s247
      %p249 = scmp.eq.s32.totalorder %s29, 0
      %p250 = por %p248, %p249
      %p251 = scmp.le.s32.totalorder 1, %s23
      %p252 = scmp.lt.s32.totalorder %s23, 5
      %p253 = pnand %p251, %p252
      %p254 = pneg %p253
      // Predicated region
      $region9: #{tpu_custom_call.1} parent=5 // pred_check
        _
      $region10: #{tpu_custom_call.1} parent=5 // pred_check_branch
        %256 = sbr.rel (%p253) target = $region12
      $region11: #{tpu_custom_call.1} parent=5 // pred_region
        %s257 = ssub.s32 %s23, 1
        // Predicated region
        $region13: #{tpu_custom_call.1} parent=11 // pred_check
          %p258 = pneg %p70
        $region14: #{tpu_custom_call.1} parent=11 // pred_check_branch
          %260 = sbr.rel (%p258) target = $region16
        $region15: #{tpu_custom_call.1} parent=11 // pred_region
          %s262 = ssub.s32 512, 512
          %263 = vsyncadd [#allocation6], %s262
          %s264 = sshll.u32 [#allocation5], 4
          %s265 = int_to_ptr.vmem [resolvable:$true] %s264
          %270 = dma.hbm_to_vmem [thread:$0]  %s1, 512, %s265, [#allocation6], 64, 64, 4
        $region16: #{tpu_custom_call.1} parent=11 // pred_fallthru
          _
        // Predicated region
        $region17: #{tpu_custom_call.1} parent=11 // pred_check
          %p271 = pneg %p91
        $region18: #{tpu_custom_call.1} parent=11 // pred_check_branch
          %273 = sbr.rel (%p271) target = $region20
        $region19: #{tpu_custom_call.1} parent=11 // pred_region
          _
        $region20: #{tpu_custom_call.1} parent=11 // pred_fallthru
          _
        // Predicated region
        $region21: #{tpu_custom_call.1} parent=11 // pred_check
          %p274 = pneg %p112
        $region22: #{tpu_custom_call.1} parent=11 // pred_check_branch
          %276 = sbr.rel (%p274) target = $region24
        $region23: #{tpu_custom_call.1} parent=11 // pred_region
          %s278 = ssub.s32 1024, 1024
          %279 = vsyncadd [#allocation6], %s278
          %s280 = sshll.u32 [#allocation7], 4
          %s281 = int_to_ptr.vmem [resolvable:$true] %s280
          %286 = dma.hbm_to_vmem [thread:$0]  %s3, 1024, %s281, [#allocation6], 64, 64, 4
        $region24: #{tpu_custom_call.1} parent=11 // pred_fallthru
          _
        // Predicated region
        $region25: #{tpu_custom_call.1} parent=11 // pred_check
          %p287 = pneg %p133
        $region26: #{tpu_custom_call.1} parent=11 // pred_check_branch
          %289 = sbr.rel (%p287) target = $region28
        $region27: #{tpu_custom_call.1} parent=11 // pred_region
          _
        $region28: #{tpu_custom_call.1} parent=11 // pred_fallthru
          _
        // Predicated region
        $region29: #{tpu_custom_call.1} parent=11 // pred_check
          %p290 = pneg %p154
        $region30: #{tpu_custom_call.1} parent=11 // pred_check_branch
          %292 = sbr.rel (%p290) target = $region32
        $region31: #{tpu_custom_call.1} parent=11 // pred_region
          %s294 = ssub.s32 1024, 1024
          %295 = vsyncadd [#allocation9], %s294
          %s296 = sshll.u32 [#allocation8], 4
          %s297 = int_to_ptr.vmem [resolvable:$true] %s296
          %302 = dma.hbm_to_vmem [thread:$0]  %s5, 1024, %s297, [#allocation9], 64, 64, 4
        $region32: #{tpu_custom_call.1} parent=11 // pred_fallthru
          _
        // Predicated region
        $region33: #{tpu_custom_call.1} parent=11 // pred_check
          %p303 = pneg %p175
        $region34: #{tpu_custom_call.1} parent=11 // pred_check_branch
          %305 = sbr.rel (%p303) target = $region36
        $region35: #{tpu_custom_call.1} parent=11 // pred_region
          _
        $region36: #{tpu_custom_call.1} parent=11 // pred_fallthru
          _
        // Predicated region
        $region37: #{tpu_custom_call.1} parent=11 // pred_check
          %p306 = pneg %p196
        $region38: #{tpu_custom_call.1} parent=11 // pred_check_branch
          %308 = sbr.rel (%p306) target = $region40
        $region39: #{tpu_custom_call.1} parent=11 // pred_region
          %s310 = ssub.s32 1024, 1024
          %311 = vsyncadd [#allocation9], %s310
          %s312 = sshll.u32 [#allocation10], 4
          %s313 = int_to_ptr.vmem [resolvable:$true] %s312
          %318 = dma.hbm_to_vmem [thread:$0]  %s7, 1024, %s313, [#allocation9], 64, 64, 4
        $region40: #{tpu_custom_call.1} parent=11 // pred_fallthru
          _
        // Predicated region
        $region41: #{tpu_custom_call.1} parent=11 // pred_check
          %p319 = pneg %p217
        $region42: #{tpu_custom_call.1} parent=11 // pred_check_branch
          %321 = sbr.rel (%p319) target = $region44
        $region43: #{tpu_custom_call.1} parent=11 // pred_region
          _
        $region44: #{tpu_custom_call.1} parent=11 // pred_fallthru
          _
      $region12: #{tpu_custom_call.1} parent=5 // pred_fallthru
        _
      %p322 = scmp.lt.s32.totalorder %s23, 4
      // Predicated region
      $region45: #{tpu_custom_call.1} parent=5 // pred_check
        %p323 = pneg %p322
      $region46: #{tpu_custom_call.1} parent=5 // pred_check_branch
        %325 = sbr.rel (%p323) target = $region48
      $region47: #{tpu_custom_call.1} parent=5 // pred_region
        // Predicated region
        $region49: #{tpu_custom_call.1} parent=47 // pred_check
          %p326 = pneg %p43
        $region50: #{tpu_custom_call.1} parent=47 // pred_check_branch
          %328 = sbr.rel (%p326) target = $region52
        $region51: #{tpu_custom_call.1} parent=47 // pred_region
          %s329 = sand.u32 %s33, 1
          %s330 = scalar_lea.sflag [#allocation3], %s329
          %s331 = sand.u32 %s33, 1
          %s332 = smul.addr %s331, 8
          %s333 = scalar_lea.vmem [#allocation2], %s332
          %s334 = smul.u32 2, %s23
          %s336 = ssub.s32 128, 128
          %337 = vsyncadd %s330, %s336
          %s338 = smul.addr %s334, 64
          %s339 = scalar_lea.hbm %s0, %s338
          %s340 = sshll.u32 %s333, 4
          %s341 = int_to_ptr.vmem [resolvable:$true] %s340
          %346 = dma.hbm_to_vmem [thread:$0]  %s339, 128, %s341, %s330, 64, 64, 4
        $region52: #{tpu_custom_call.1} parent=47 // pred_fallthru
          _
      $region48: #{tpu_custom_call.1} parent=5 // pred_fallthru
        _
      %p347 = scmp.le.s32.totalorder 1, %s23
      %p348 = scmp.lt.s32.totalorder %s23, 5
      %p349 = pnand %p347, %p348
      %p350 = pneg %p349
      // Predicated region
      $region53: #{tpu_custom_call.1} parent=5 // pred_check
        _
      $region54: #{tpu_custom_call.1} parent=5 // pred_check_branch
        %352 = sbr.rel (%p349) target = $region56
      $region55: #{tpu_custom_call.1} parent=5 // pred_region
        %s353 = ssub.s32 %s23, 1
        %s354 = sand.u32 %s36, 1
        %s355 = scalar_lea.sflag [#allocation3], %s354
        %s356 = sand.u32 %s36, 1
        %s357 = smul.addr %s356, 8
        %s358 = scalar_lea.vmem [#allocation2], %s357
        // Predicated region
        $region57: #{tpu_custom_call.1} parent=55 // pred_check
          %p359 = pneg %p49
        $region58: #{tpu_custom_call.1} parent=55 // pred_check_branch
          %361 = sbr.rel (%p359) target = $region60
        $region59: #{tpu_custom_call.1} parent=55 // pred_region
          %362 = dma.done %s355, 128
        $region60: #{tpu_custom_call.1} parent=55 // pred_fallthru
          _
        // Predicated region
        $region61: #{tpu_custom_call.1} parent=55 // pred_check
          %p363 = pneg %p70
        $region62: #{tpu_custom_call.1} parent=55 // pred_check_branch
          %365 = sbr.rel (%p363) target = $region64
        $region63: #{tpu_custom_call.1} parent=55 // pred_region
          %366 = dma.done [#allocation6], 512
        $region64: #{tpu_custom_call.1} parent=55 // pred_fallthru
          _
        // Predicated region
        $region65: #{tpu_custom_call.1} parent=55 // pred_check
          %p367 = pneg %p112
        $region66: #{tpu_custom_call.1} parent=55 // pred_check_branch
          %369 = sbr.rel (%p367) target = $region68
        $region67: #{tpu_custom_call.1} parent=55 // pred_region
          %370 = dma.done [#allocation6], 1024
        $region68: #{tpu_custom_call.1} parent=55 // pred_fallthru
          _
        // Predicated region
        $region69: #{tpu_custom_call.1} parent=55 // pred_check
          %p371 = pneg %p154
        $region70: #{tpu_custom_call.1} parent=55 // pred_check_branch
          %373 = sbr.rel (%p371) target = $region72
        $region71: #{tpu_custom_call.1} parent=55 // pred_region
          %374 = dma.done [#allocation9], 1024
        $region72: #{tpu_custom_call.1} parent=55 // pred_fallthru
          _
        // Predicated region
        $region73: #{tpu_custom_call.1} parent=55 // pred_check
          %p375 = pneg %p196
        $region74: #{tpu_custom_call.1} parent=55 // pred_check_branch
          %377 = sbr.rel (%p375) target = $region76
        $region75: #{tpu_custom_call.1} parent=55 // pred_region
          %378 = dma.done [#allocation9], 1024
        $region76: #{tpu_custom_call.1} parent=55 // pred_fallthru
          _
        %s379 = sand.u32 %s36, 1
        %s380 = scalar_lea.sflag [#allocation3], %s379
        %s381 = sand.u32 %s36, 1
        %s382 = smul.addr %s381, 8
        %s383 = scalar_lea.vmem [#allocation2], %s382
        %p384 = pneg %p49
        %p385 = pneg %p46
        %p386 = pneg %p70
        %p387 = pneg %p67
        %p388 = pneg %p91
        %p389 = pneg %p88
        %p390 = pneg %p112
        %p391 = pneg %p109
        %p392 = pneg %p133
        %p393 = pneg %p130
        %p394 = pneg %p154
        %p395 = pneg %p151
        %p396 = pneg %p175
        %p397 = pneg %p172
        %p398 = pneg %p196
        %p399 = pneg %p193
        %p400 = pneg %p217
        %p401 = pneg %p214
        %p402 = pneg %p243
        %p403 = pneg %p240
        %s404 = sand.u32 %s230, 1
        %s405 = scalar_lea.sflag [#allocation4], %s404
        %s406 = sand.u32 %s230, 1
        %s407 = smul.addr %s406, 16
        %s408 = scalar_lea.vmem [#allocation11], %s407
        %s409 = smul.u32 2, %s28
        %s410 = smul.u32 2, %s28
        %v412 = vld [vmem:[%s358] sm:$0xf]
        %v413 = vld [vmem:[%s358 + $0x4] sm:$0xf]
        %v414 = vld [vmem:[#allocation5] sm:$0xf]
        %v415 = vld [vmem:[#allocation5 + $0x4] sm:$0xf]
        %v416 = vld [vmem:[#allocation5 + $0x8] sm:$0xf]
        %v417 = vld [vmem:[#allocation5 + $0xc] sm:$0xf]
        %v418 = vld [vmem:[#allocation5 + $0x10] sm:$0xf]
        %v419 = vld [vmem:[#allocation5 + $0x14] sm:$0xf]
        %v420 = vld [vmem:[#allocation5 + $0x18] sm:$0xf]
        %v421 = vld [vmem:[#allocation5 + $0x1c] sm:$0xf]
        %v422 = vld [vmem:[%s2] sm:$0x1]
        %v424 = vlaneseq
        %v425 = vshrl.u32 %v424, 7
        %v426 = vsub.s32 0, %v425
        %v427 = vrot.slane %v422, %v426
        %v431 = vunpack.c.l.b16 %v412
        %v432 = vunpack.c.l.b16 %v413
        %v433 = vpack.c.b16 %v432, %v431
        %v442 = vunpack.c.l.b16 %v414
        %v443 = vunpack.c.l.b16 %v415
        %v444 = vunpack.c.l.b16 %v416
        %v445 = vunpack.c.l.b16 %v417
        %v446 = vunpack.c.l.b16 %v418
        %v447 = vunpack.c.l.b16 %v419
        %v448 = vunpack.c.l.b16 %v420
        %v449 = vunpack.c.l.b16 %v421
        %v450 = vpack.c.b16 %v443, %v442
        %v451 = vpack.c.b16 %v445, %v444
        %v452 = vpack.c.b16 %v447, %v446
        %v453 = vpack.c.b16 %v449, %v448
        %vm458 = vcmask 523264
        %v460 = vsel %vm458, %v433, 0
        %462 = vmatprep.subr.bf16.mxu0 0
        %463 = vmatpush1.bf16.msra.mxu0 %v450
        %464 = vmatprep.subr.bf16.mxu0 0
        %465 = vmatpush1.bf16.msra.mxu0 %v451
        %466 = vmatprep.subr.bf16.mxu0 0
        %467 = vmatpush1.bf16.msra.mxu0 %v452
        %468 = vmatprep.subr.bf16.mxu0 0
        %469 = vmatpush1.bf16.msra.mxu0 %v453
        %470 = vmatprep.subr.bf16.mxu0 0
        %471 = vmatpush1.bf16.msra.mxu0 0
        %472 = vmatprep.subr.bf16.mxu0 0
        %473 = vmatpush1.bf16.msra.mxu0 0
        %474 = vmatprep.subr.bf16.mxu0 0
        %475 = vmatpush1.bf16.msra.mxu0 0
        %476 = vmatprep.subr.bf16.mxu0 0
        %477 = vmatpush1.bf16.msra.mxu0 0
        %478 = vmatprep.subr.bf16.mxu0 0
        %479 = vmatpush1.bf16.msra.mxu0 0
        %480 = vmatprep.subr.bf16.mxu0 0
        %481 = vmatpush1.bf16.msra.mxu0 0
        %482 = vmatprep.subr.bf16.mxu0 0
        %483 = vmatpush1.bf16.msra.mxu0 0
        %484 = vmatprep.subr.bf16.mxu0 0
        %485 = vmatpush1.bf16.msra.mxu0 0
        %486 = vmatprep.subr.bf16.mxu0 0
        %487 = vmatpush1.bf16.msra.mxu0 0
        %488 = vmatprep.subr.bf16.mxu0 0
        %489 = vmatpush1.bf16.msra.mxu0 0
        %490 = vmatprep.subr.bf16.mxu0 0
        %491 = vmatpush1.bf16.msra.mxu0 0
        %492 = vmatprep.subr.bf16.mxu0 0
        %493 = vmatpush1.bf16.msra.mxu0 0
        %494 = vmatprep.mubr.bf16.mxu0 0
        %495 = vmatmul.mubr.bf16.gmra.mrb[0].mxu0 %v460
        %v496 = vpop.f32.mrb[0].mxu0
        %v497 = vadd.f32 %v427, %v496
        %v498 = vpop.f32.mrb[0].mxu0
        %v499 = vpop.f32.mrb[0].mxu0
        %v500 = vadd.f32 %v427, %v499
        %v501 = vpop.f32.mrb[0].mxu0
        %502 = vdwg.mxu0
        %v503 = vmul.f32 %v497, 0.2
        %v504 = vmul.f32 %v500, 0.2
        %v505 = vmax.f32 %v497, %v503
        %v506 = vmax.f32 %v500, %v504
        %v507 = vld [vmem:[#allocation7] sm:$0xf]
        %v508 = vld [vmem:[#allocation7 + $0x4] sm:$0xf]
        %v509 = vld [vmem:[#allocation7 + $0x8] sm:$0xf]
        %v510 = vld [vmem:[#allocation7 + $0xc] sm:$0xf]
        %v511 = vld [vmem:[#allocation7 + $0x10] sm:$0xf]
        %v512 = vld [vmem:[#allocation7 + $0x14] sm:$0xf]
        %v513 = vld [vmem:[#allocation7 + $0x18] sm:$0xf]
        %v514 = vld [vmem:[#allocation7 + $0x1c] sm:$0xf]
        %v515 = vld [vmem:[#allocation7 + $0x20] sm:$0xf]
        %v516 = vld [vmem:[#allocation7 + $0x24] sm:$0xf]
        %v517 = vld [vmem:[#allocation7 + $0x28] sm:$0xf]
        %v518 = vld [vmem:[#allocation7 + $0x2c] sm:$0xf]
        %v519 = vld [vmem:[#allocation7 + $0x30] sm:$0xf]
        %v520 = vld [vmem:[#allocation7 + $0x34] sm:$0xf]
        %v521 = vld [vmem:[#allocation7 + $0x38] sm:$0xf]
        %v522 = vld [vmem:[#allocation7 + $0x3c] sm:$0xf]
        %v523 = vld [vmem:[%s4] sm:$0x1]
        %v524 = vpack.c.bf16 %v506, %v505
        %v526 = vlaneseq
        %v527 = vshrl.u32 %v526, 7
        %v528 = vsub.s32 0, %v527
        %v529 = vrot.slane %v523, %v528
        %v547 = vunpack.c.l.b16 %v507
        %v548 = vunpack.c.l.b16 %v508
        %v549 = vunpack.c.l.b16 %v509
        %v550 = vunpack.c.l.b16 %v510
        %v551 = vunpack.c.l.b16 %v511
        %v552 = vunpack.c.l.b16 %v512
        %v553 = vunpack.c.l.b16 %v513
        %v554 = vunpack.c.l.b16 %v514
        %v555 = vunpack.c.l.b16 %v515
        %v556 = vunpack.c.l.b16 %v516
        %v557 = vunpack.c.l.b16 %v517
        %v558 = vunpack.c.l.b16 %v518
        %v559 = vunpack.c.l.b16 %v519
        %v560 = vunpack.c.l.b16 %v520
        %v561 = vunpack.c.l.b16 %v521
        %v562 = vunpack.c.l.b16 %v522
        %v563 = vpack.c.b16 %v548, %v547
        %v564 = vpack.c.b16 %v550, %v549
        %v565 = vpack.c.b16 %v552, %v551
        %v566 = vpack.c.b16 %v554, %v553
        %v567 = vpack.c.b16 %v556, %v555
        %v568 = vpack.c.b16 %v558, %v557
        %v569 = vpack.c.b16 %v560, %v559
        %v570 = vpack.c.b16 %v562, %v561
        %579 = vmatprep.subr.bf16.mxu0 0
        %580 = vmatpush1.bf16.msra.mxu0 %v563
        %581 = vmatprep.subr.bf16.mxu0 0
        %582 = vmatpush1.bf16.msra.mxu0 %v564
        %583 = vmatprep.subr.bf16.mxu0 0
        %584 = vmatpush1.bf16.msra.mxu0 %v565
        %585 = vmatprep.subr.bf16.mxu0 0
        %586 = vmatpush1.bf16.msra.mxu0 %v566
        %587 = vmatprep.subr.bf16.mxu0 0
        %588 = vmatpush1.bf16.msra.mxu0 %v567
        %589 = vmatprep.subr.bf16.mxu0 0
        %590 = vmatpush1.bf16.msra.mxu0 %v568
        %591 = vmatprep.subr.bf16.mxu0 0
        %592 = vmatpush1.bf16.msra.mxu0 %v569
        %593 = vmatprep.subr.bf16.mxu0 0
        %594 = vmatpush1.bf16.msra.mxu0 %v570
        %595 = vmatprep.subr.bf16.mxu0 0
        %596 = vmatpush1.bf16.msra.mxu0 0
        %597 = vmatprep.subr.bf16.mxu0 0
        %598 = vmatpush1.bf16.msra.mxu0 0
        %599 = vmatprep.subr.bf16.mxu0 0
        %600 = vmatpush1.bf16.msra.mxu0 0
        %601 = vmatprep.subr.bf16.mxu0 0
        %602 = vmatpush1.bf16.msra.mxu0 0
        %603 = vmatprep.subr.bf16.mxu0 0
        %604 = vmatpush1.bf16.msra.mxu0 0
        %605 = vmatprep.subr.bf16.mxu0 0
        %606 = vmatpush1.bf16.msra.mxu0 0
        %607 = vmatprep.subr.bf16.mxu0 0
        %608 = vmatpush1.bf16.msra.mxu0 0
        %609 = vmatprep.subr.bf16.mxu0 0
        %610 = vmatpush1.bf16.msra.mxu0 0
        %611 = vmatprep.mubr.bf16.mxu0 0
        %612 = vmatmul.mubr.bf16.gmra.mrb[0].mxu0 %v524
        %v613 = vpop.f32.mrb[0].mxu0
        %v614 = vadd.f32 %v529, %v613
        %v615 = vpop.f32.mrb[0].mxu0
        %v616 = vpop.f32.mrb[0].mxu0
        %v617 = vadd.f32 %v529, %v616
        %v618 = vpop.f32.mrb[0].mxu0
        %619 = vdwg.mxu0
        %v620 = vmul.f32 %v614, 0.2
        %v621 = vmul.f32 %v617, 0.2
        %v622 = vmax.f32 %v614, %v620
        %v623 = vmax.f32 %v617, %v621
        %v624 = vld [vmem:[#allocation8] sm:$0xf]
        %v625 = vld [vmem:[#allocation8 + $0x4] sm:$0xf]
        %v626 = vld [vmem:[#allocation8 + $0x8] sm:$0xf]
        %v627 = vld [vmem:[#allocation8 + $0xc] sm:$0xf]
        %v628 = vld [vmem:[#allocation8 + $0x10] sm:$0xf]
        %v629 = vld [vmem:[#allocation8 + $0x14] sm:$0xf]
        %v630 = vld [vmem:[#allocation8 + $0x18] sm:$0xf]
        %v631 = vld [vmem:[#allocation8 + $0x1c] sm:$0xf]
        %v632 = vld [vmem:[#allocation8 + $0x20] sm:$0xf]
        %v633 = vld [vmem:[#allocation8 + $0x24] sm:$0xf]
        %v634 = vld [vmem:[#allocation8 + $0x28] sm:$0xf]
        %v635 = vld [vmem:[#allocation8 + $0x2c] sm:$0xf]
        %v636 = vld [vmem:[#allocation8 + $0x30] sm:$0xf]
        %v637 = vld [vmem:[#allocation8 + $0x34] sm:$0xf]
        %v638 = vld [vmem:[#allocation8 + $0x38] sm:$0xf]
        %v639 = vld [vmem:[#allocation8 + $0x3c] sm:$0xf]
        %v640 = vld [vmem:[%s6] sm:$0x1]
        %v641 = vpack.c.bf16 %v623, %v622
        %v643 = vlaneseq
        %v644 = vshrl.u32 %v643, 7
        %v645 = vsub.s32 0, %v644
        %v646 = vrot.slane %v640, %v645
        %v664 = vunpack.c.l.b16 %v624
        %v665 = vunpack.c.l.b16 %v625
        %v666 = vunpack.c.l.b16 %v626
        %v667 = vunpack.c.l.b16 %v627
        %v668 = vunpack.c.l.b16 %v628
        %v669 = vunpack.c.l.b16 %v629
        %v670 = vunpack.c.l.b16 %v630
        %v671 = vunpack.c.l.b16 %v631
        %v672 = vunpack.c.l.b16 %v632
        %v673 = vunpack.c.l.b16 %v633
        %v674 = vunpack.c.l.b16 %v634
        %v675 = vunpack.c.l.b16 %v635
        %v676 = vunpack.c.l.b16 %v636
        %v677 = vunpack.c.l.b16 %v637
        %v678 = vunpack.c.l.b16 %v638
        %v679 = vunpack.c.l.b16 %v639
        %v680 = vpack.c.b16 %v665, %v664
        %v681 = vpack.c.b16 %v667, %v666
        %v682 = vpack.c.b16 %v669, %v668
        %v683 = vpack.c.b16 %v671, %v670
        %v684 = vpack.c.b16 %v673, %v672
        %v685 = vpack.c.b16 %v675, %v674
        %v686 = vpack.c.b16 %v677, %v676
        %v687 = vpack.c.b16 %v679, %v678
        %696 = vmatprep.subr.bf16.mxu0 0
        %697 = vmatpush1.bf16.msra.mxu0 %v680
        %698 = vmatprep.subr.bf16.mxu0 0
        %699 = vmatpush1.bf16.msra.mxu0 %v681
        %700 = vmatprep.subr.bf16.mxu0 0
        %701 = vmatpush1.bf16.msra.mxu0 %v682
        %702 = vmatprep.subr.bf16.mxu0 0
        %703 = vmatpush1.bf16.msra.mxu0 %v683
        %704 = vmatprep.subr.bf16.mxu0 0
        %705 = vmatpush1.bf16.msra.mxu0 %v684
        %706 = vmatprep.subr.bf16.mxu0 0
        %707 = vmatpush1.bf16.msra.mxu0 %v685
        %708 = vmatprep.subr.bf16.mxu0 0
        %709 = vmatpush1.bf16.msra.mxu0 %v686
        %710 = vmatprep.subr.bf16.mxu0 0
        %711 = vmatpush1.bf16.msra.mxu0 %v687
        %712 = vmatprep.subr.bf16.mxu0 0
        %713 = vmatpush1.bf16.msra.mxu0 0
        %714 = vmatprep.subr.bf16.mxu0 0
        %715 = vmatpush1.bf16.msra.mxu0 0
        %716 = vmatprep.subr.bf16.mxu0 0
        %717 = vmatpush1.bf16.msra.mxu0 0
        %718 = vmatprep.subr.bf16.mxu0 0
        %719 = vmatpush1.bf16.msra.mxu0 0
        %720 = vmatprep.subr.bf16.mxu0 0
        %721 = vmatpush1.bf16.msra.mxu0 0
        %722 = vmatprep.subr.bf16.mxu0 0
        %723 = vmatpush1.bf16.msra.mxu0 0
        %724 = vmatprep.subr.bf16.mxu0 0
        %725 = vmatpush1.bf16.msra.mxu0 0
        %726 = vmatprep.subr.bf16.mxu0 0
        %727 = vmatpush1.bf16.msra.mxu0 0
        %728 = vmatprep.mubr.bf16.mxu0 0
        %729 = vmatmul.mubr.bf16.gmra.mrb[0].mxu0 %v641
        %v730 = vpop.f32.mrb[0].mxu0
        %v731 = vadd.f32 %v646, %v730
        %v732 = vpop.f32.mrb[0].mxu0
        %v733 = vpop.f32.mrb[0].mxu0
        %v734 = vadd.f32 %v646, %v733
        %v735 = vpop.f32.mrb[0].mxu0
        %736 = vdwg.mxu0
        %v737 = vmul.f32 %v731, 0.2
        %v738 = vmul.f32 %v734, 0.2
        %v739 = vmax.f32 %v731, %v737
        %v740 = vmax.f32 %v734, %v738
        %v741 = vld [vmem:[#allocation10] sm:$0xf]
        %v742 = vld [vmem:[#allocation10 + $0x4] sm:$0xf]
        %v743 = vld [vmem:[#allocation10 + $0x8] sm:$0xf]
        %v744 = vld [vmem:[#allocation10 + $0xc] sm:$0xf]
        %v745 = vld [vmem:[#allocation10 + $0x10] sm:$0xf]
        %v746 = vld [vmem:[#allocation10 + $0x14] sm:$0xf]
        %v747 = vld [vmem:[#allocation10 + $0x18] sm:$0xf]
        %v748 = vld [vmem:[#allocation10 + $0x1c] sm:$0xf]
        %v749 = vld [vmem:[#allocation10 + $0x20] sm:$0xf]
        %v750 = vld [vmem:[#allocation10 + $0x24] sm:$0xf]
        %v751 = vld [vmem:[#allocation10 + $0x28] sm:$0xf]
        %v752 = vld [vmem:[#allocation10 + $0x2c] sm:$0xf]
        %v753 = vld [vmem:[#allocation10 + $0x30] sm:$0xf]
        %v754 = vld [vmem:[#allocation10 + $0x34] sm:$0xf]
        %v755 = vld [vmem:[#allocation10 + $0x38] sm:$0xf]
        %v756 = vld [vmem:[#allocation10 + $0x3c] sm:$0xf]
        %v757 = vld [vmem:[%s8] sm:$0x1]
        %v758 = vpack.c.bf16 %v740, %v739
        %v760 = vlaneseq
        %v761 = vshrl.u32 %v760, 7
        %v762 = vsub.s32 0, %v761
        %v763 = vrot.slane %v757, %v762
        %v781 = vunpack.c.l.b16 %v741
        %v782 = vunpack.c.l.b16 %v742
        %v783 = vunpack.c.l.b16 %v743
        %v784 = vunpack.c.l.b16 %v744
        %v785 = vunpack.c.l.b16 %v745
        %v786 = vunpack.c.l.b16 %v746
        %v787 = vunpack.c.l.b16 %v747
        %v788 = vunpack.c.l.b16 %v748
        %v789 = vunpack.c.l.b16 %v749
        %v790 = vunpack.c.l.b16 %v750
        %v791 = vunpack.c.l.b16 %v751
        %v792 = vunpack.c.l.b16 %v752
        %v793 = vunpack.c.l.b16 %v753
        %v794 = vunpack.c.l.b16 %v754
        %v795 = vunpack.c.l.b16 %v755
        %v796 = vunpack.c.l.b16 %v756
        %v797 = vpack.c.b16 %v782, %v781
        %v798 = vpack.c.b16 %v784, %v783
        %v799 = vpack.c.b16 %v786, %v785
        %v800 = vpack.c.b16 %v788, %v787
        %v801 = vpack.c.b16 %v790, %v789
        %v802 = vpack.c.b16 %v792, %v791
        %v803 = vpack.c.b16 %v794, %v793
        %v804 = vpack.c.b16 %v796, %v795
        %813 = vmatprep.subr.bf16.mxu0 0
        %814 = vmatpush1.bf16.msra.mxu0 %v797
        %815 = vmatprep.subr.bf16.mxu0 0
        %816 = vmatpush1.bf16.msra.mxu0 %v798
        %817 = vmatprep.subr.bf16.mxu0 0
        %818 = vmatpush1.bf16.msra.mxu0 %v799
        %819 = vmatprep.subr.bf16.mxu0 0
        %820 = vmatpush1.bf16.msra.mxu0 %v800
        %821 = vmatprep.subr.bf16.mxu0 0
        %822 = vmatpush1.bf16.msra.mxu0 %v801
        %823 = vmatprep.subr.bf16.mxu0 0
        %824 = vmatpush1.bf16.msra.mxu0 %v802
        %825 = vmatprep.subr.bf16.mxu0 0
        %826 = vmatpush1.bf16.msra.mxu0 %v803
        %827 = vmatprep.subr.bf16.mxu0 0
        %828 = vmatpush1.bf16.msra.mxu0 %v804
        %829 = vmatprep.subr.bf16.mxu0 0
        %830 = vmatpush1.bf16.msra.mxu0 0
        %831 = vmatprep.subr.bf16.mxu0 0
        %832 = vmatpush1.bf16.msra.mxu0 0
        %833 = vmatprep.subr.bf16.mxu0 0
        %834 = vmatpush1.bf16.msra.mxu0 0
        %835 = vmatprep.subr.bf16.mxu0 0
        %836 = vmatpush1.bf16.msra.mxu0 0
        %837 = vmatprep.subr.bf16.mxu0 0
        %838 = vmatpush1.bf16.msra.mxu0 0
        %839 = vmatprep.subr.bf16.mxu0 0
        %840 = vmatpush1.bf16.msra.mxu0 0
        %841 = vmatprep.subr.bf16.mxu0 0
        %842 = vmatpush1.bf16.msra.mxu0 0
        %843 = vmatprep.subr.bf16.mxu0 0
        %844 = vmatpush1.bf16.msra.mxu0 0
        %845 = vmatprep.mubr.bf16.mxu0 0
        %846 = vmatmul.mubr.bf16.gmra.mrb[0].mxu0 %v758
        %v847 = vpop.f32.mrb[0].mxu0
        %v848 = vadd.f32 %v763, %v847
        %v849 = vpop.f32.mrb[0].mxu0
        %v850 = vpop.f32.mrb[0].mxu0
        %v851 = vadd.f32 %v763, %v850
        %v852 = vpop.f32.mrb[0].mxu0
        %853 = vdwg.mxu0
        %854 = vst [vmem:[%s408] sm:$0xff] %v848
        %855 = vst [vmem:[%s408 + $0x8] sm:$0xff] %v851
        %s856 = sand.u32 %s230, 1
        %s857 = scalar_lea.sflag [#allocation4], %s856
        %s858 = sand.u32 %s230, 1
        %s859 = smul.addr %s858, 16
        %s860 = scalar_lea.vmem [#allocation11], %s859
        // Predicated region
        $region77: #{tpu_custom_call.1} parent=55 // pred_check
          %p861 = pneg %p240
        $region78: #{tpu_custom_call.1} parent=55 // pred_check_branch
          %863 = sbr.rel (%p861) target = $region80
        $region79: #{tpu_custom_call.1} parent=55 // pred_region
          %s864 = smul.u32 2, %s28
          %s866 = ssub.s32 256, 256
          %867 = vsyncadd %s857, %s866
          %s868 = smul.addr %s864, 128
          %s869 = scalar_lea.hbm %s9, %s868
          %s870 = sshll.u32 %s860, 4
          %s871 = int_to_ptr.vmem [resolvable:$true] %s870
          %876 = dma.vmem_to_hbm [thread:$0]  %s871, 256, %s869, %s857, 128, 128, 8
        $region80: #{tpu_custom_call.1} parent=55 // pred_fallthru
          _
      $region56: #{tpu_custom_call.1} parent=5 // pred_fallthru
        _
      %p877 = scmp.le.s32.totalorder 2, %s23
      // Predicated region
      $region81: #{tpu_custom_call.1} parent=5 // pred_check
        %p878 = pneg %p877
      $region82: #{tpu_custom_call.1} parent=5 // pred_check_branch
        %880 = sbr.rel (%p878) target = $region84
      $region83: #{tpu_custom_call.1} parent=5 // pred_region
        %s881 = ssub.s32 %s23, 2
        // Predicated region
        $region85: #{tpu_custom_call.1} parent=83 // pred_check
          %p882 = pneg %p246
        $region86: #{tpu_custom_call.1} parent=83 // pred_check_branch
          %884 = sbr.rel (%p882) target = $region88
        $region87: #{tpu_custom_call.1} parent=83 // pred_region
          %s885 = sand.u32 %s231, 1
          %s886 = scalar_lea.sflag [#allocation4], %s885
          %s887 = sand.u32 %s231, 1
          %s888 = smul.addr %s887, 16
          %s889 = scalar_lea.vmem [#allocation11], %s888
          %890 = dma.done %s886, 256
        $region88: #{tpu_custom_call.1} parent=83 // pred_fallthru
          _
      $region84: #{tpu_custom_call.1} parent=5 // pred_fallthru
        _
    $region6: #{tpu_custom_call.1} parent=1 // loop_footer
      %s27 = sadd.s32 1, %s23
    $region7: #{tpu_custom_call.1} parent=1 // loop_footer_branch
      %22 = sbr.rel target = $region3
    $region8: #{tpu_custom_call.1} parent=1 // loop_exit
      _
    %891 = vsyncpa [#allocation3], 1
    %s892 = scalar_lea.sflag [#allocation3], 1
    %893 = vsyncpa %s892, 1
    %894 = vsyncpa [#allocation6], 1
    %895 = vsyncpa [#allocation9], 1
    %896 = vsyncpa [#allocation4], 1
    %s897 = scalar_lea.sflag [#allocation4], 1
    %898 = vsyncpa %s897, 1

</llo_original>
